<compile_context>
chip_gen: v5e
topology: v5e:2x2
jax: 0.10.0
libtpu: 0.0.40
codegen_flags: <defaults>
</compile_context>

<pallas_src>
import math

import jax
import jax.numpy as jnp
from jax.experimental import pallas as pl
from jax.experimental.pallas import tpu as pltpu


def _gelu_tanh(x):
    # tanh-approximate GELU (maps cleanly onto the TPU EUP).
    # TODO(synk): PyTorch nn.GELU() default is the exact erf form; the tanh
    # approximation differs by ~1e-3 in the tails.
    c = math.sqrt(2.0 / math.pi)
    return 0.5 * x * (1.0 + jnp.tanh(c * (x + 0.044715 * x * x * x)))


def residual_ff_kernel(x_ref, g_ref, b_ref, w1_ref, b1_ref, w2_ref, b2_ref, o_ref):
    # Grid-invariant parameters: read once into locals per step (cheap VMEM
    # reads; the blocks themselves are resident thanks to constant index_maps).
    g = g_ref[...].astype(jnp.float32)       # (1, D)
    beta = b_ref[...].astype(jnp.float32)    # (1, D)
    b1 = b1_ref[...].astype(jnp.float32)     # (1, H)
    b2 = b2_ref[...].astype(jnp.float32)     # (1, D)
    w1 = w1_ref[...].astype(jnp.float32)     # (D, H)
    w2 = w2_ref[...].astype(jnp.float32)     # (H, D)

    x = x_ref[...].astype(jnp.float32)       # (tm, D) token-major tile

    # --- fn: LayerNorm over the embedding dim D (lane reduction) ---
    mu = jnp.mean(x, axis=-1, keepdims=True)             # (tm, 1)
    xc = x - mu
    var = jnp.mean(xc * xc, axis=-1, keepdims=True)      # (tm, 1)
    xn = xc * jax.lax.rsqrt(var + 1e-5)
    xn = xn * g + beta                                   # (tm, D)

    # --- fn: Linear(D,H) -> GELU -> Linear(H,D) ---
    h = jnp.dot(xn, w1, preferred_element_type=jnp.float32) + b1   # (tm, H)
    h = _gelu_tanh(h)
    y = jnp.dot(h, w2, preferred_element_type=jnp.float32) + b2    # (tm, D)

    # --- ResidualAdd: x += res ---
    o_ref[...] = (y + x).astype(o_ref.dtype)


def _round_up(a, b):
    return pl.cdiv(a, b) * b


def residual_add(x, gamma, beta, w1, b1, w2, b2, *, tm=2048):
    """out = x + FF(LayerNorm(x)); x: (B, S, D).

    gamma/beta: (D,), w1: (D, H), b1: (H,), w2: (H, D), b2: (D,)
    (weights stored as (in, out) = W^T of PyTorch's nn.Linear layout).
    """
    B, S, D = x.shape
    H = w1.shape[1]
    M = B * S

    # Token tile: large (amortizes per-step overhead), clamped for small M.
    # Only needs to be a multiple of 8 (sublane); D is the full minor dim.
    tm_eff = min(tm, _round_up(M, 8))
    grid = (pl.cdiv(M, tm_eff),)   # ragged last tile handled by Pallas masking

    x2 = x.reshape(M, D)           # pure metadata reshape, no HBM pass

    out2 = pl.pallas_call(
        residual_ff_kernel,
        out_shape=jax.ShapeDtypeStruct((M, D), x.dtype),
        grid_spec=pltpu.PrefetchScalarGridSpec(
            num_scalar_prefetch=0,
            grid=grid,
            in_specs=[
                pl.BlockSpec((tm_eff, D), lambda i: (i, 0)),  # x tile (streams)
                pl.BlockSpec((1, D), lambda i: (0, 0)),       # ln gamma (resident)
                pl.BlockSpec((1, D), lambda i: (0, 0)),       # ln beta
                pl.BlockSpec((D, H), lambda i: (0, 0)),       # w1
                pl.BlockSpec((1, H), lambda i: (0, 0)),       # b1
                pl.BlockSpec((H, D), lambda i: (0, 0)),       # w2
                pl.BlockSpec((1, D), lambda i: (0, 0)),       # b2
            ],
            out_specs=pl.BlockSpec((tm_eff, D), lambda i: (i, 0)),
        ),
        compiler_params=pltpu.CompilerParams(
            dimension_semantics=("parallel",)),
    )(x2, gamma.reshape(1, D), beta.reshape(1, D),
      w1, b1.reshape(1, H), w2, b2.reshape(1, D))

    return out2.reshape(B, S, D)


def residual_add_ref(x, gamma, beta, w1, b1, w2, b2):
    xf = x.astype(jnp.float32)
    mu = jnp.mean(xf, axis=-1, keepdims=True)
    var = jnp.mean((xf - mu) ** 2, axis=-1, keepdims=True)
    xn = (xf - mu) * jax.lax.rsqrt(var + 1e-5)
    xn = xn * gamma + beta
    h = _gelu_tanh(xn @ w1 + b1)
    y = h @ w2 + b2
    return (y + xf).astype(x.dtype)


if __name__ == "__main__":
    B, S, D, H = 2, 8, 32, 128   # batch=2, seq=8, emb=32, hidden=4*emb

    key = jax.random.PRNGKey(0)
    kx, kw1, kb1, kw2, kb2 = jax.random.split(key, 5)

    x = jax.random.normal(kx, (B, S, D), jnp.float32)

    gamma = jnp.ones((D,), jnp.float32)
    beta = jnp.zeros((D,), jnp.float32)
    w1 = jax.random.normal(kw1, (D, H), jnp.float32) * (1.0 / math.sqrt(D))
    b1 = jax.random.normal(kb1, (H,), jnp.float32) * 0.01
    w2 = jax.random.normal(kw2, (H, D), jnp.float32) * (1.0 / math.sqrt(H))
    b2 = jax.random.normal(kb2, (D,), jnp.float32) * 0.01

    out = jax.block_until_ready(residual_add(x, gamma, beta, w1, b1, w2, b2))

    ref = residual_add_ref(x, gamma, beta, w1, b1, w2, b2)
    assert out.shape == (B, S, D)
    assert jnp.allclose(out, ref, atol=1e-4, rtol=1e-4), "mismatch vs reference"

    print("KERNEL_OK")
</pallas_src>

<mosaic_0001>
module attributes {stable_mosaic.version = 11 : i64} {
  func.func @residual_ff_kernel(%arg0: i32, %arg1: memref<16x32xf32, #tpu.memory_space<vmem>>, %arg2: memref<1x32xf32, #tpu.memory_space<vmem>>, %arg3: memref<1x32xf32, #tpu.memory_space<vmem>>, %arg4: memref<32x128xf32, #tpu.memory_space<vmem>>, %arg5: memref<1x128xf32, #tpu.memory_space<vmem>>, %arg6: memref<128x32xf32, #tpu.memory_space<vmem>>, %arg7: memref<1x32xf32, #tpu.memory_space<vmem>>, %arg8: memref<16x32xf32, #tpu.memory_space<vmem>>) attributes {dimension_semantics = [#tpu.dimension_semantics<parallel>], iteration_bounds = array<i64: 1>, scalar_prefetch = 0 : i64, scratch_operands = 0 : i64, tpu.core_type = #tpu.core_type<tc>, window_params = [{transform_indices = @transform_0, window_bounds = array<i64: 16, 32>}, {pipeline_mode = #tpu.pipeline_mode<synchronous>, transform_indices = @transform_1, window_bounds = array<i64: 1, 32>}, {pipeline_mode = #tpu.pipeline_mode<synchronous>, transform_indices = @transform_2, window_bounds = array<i64: 1, 32>}, {pipeline_mode = #tpu.pipeline_mode<synchronous>, transform_indices = @transform_3, window_bounds = array<i64: 32, 128>}, {pipeline_mode = #tpu.pipeline_mode<synchronous>, transform_indices = @transform_4, window_bounds = array<i64: 1, 128>}, {pipeline_mode = #tpu.pipeline_mode<synchronous>, transform_indices = @transform_5, window_bounds = array<i64: 128, 32>}, {pipeline_mode = #tpu.pipeline_mode<synchronous>, transform_indices = @transform_6, window_bounds = array<i64: 1, 32>}, {transform_indices = @transform_7, window_bounds = array<i64: 16, 32>}]} {
    %c0 = arith.constant 0 : index
    %c0_0 = arith.constant 0 : index
    %0 = vector.load %arg2[%c0, %c0_0] : memref<1x32xf32, #tpu.memory_space<vmem>>, vector<1x32xf32>
    %c0_1 = arith.constant 0 : index
    %c0_2 = arith.constant 0 : index
    %1 = vector.load %arg3[%c0_1, %c0_2] : memref<1x32xf32, #tpu.memory_space<vmem>>, vector<1x32xf32>
    %c0_3 = arith.constant 0 : index
    %c0_4 = arith.constant 0 : index
    %2 = vector.load %arg5[%c0_3, %c0_4] : memref<1x128xf32, #tpu.memory_space<vmem>>, vector<1x128xf32>
    %c0_5 = arith.constant 0 : index
    %c0_6 = arith.constant 0 : index
    %3 = vector.load %arg7[%c0_5, %c0_6] : memref<1x32xf32, #tpu.memory_space<vmem>>, vector<1x32xf32>
    %c0_7 = arith.constant 0 : index
    %c0_8 = arith.constant 0 : index
    %4 = vector.load %arg4[%c0_7, %c0_8] : memref<32x128xf32, #tpu.memory_space<vmem>>, vector<32x128xf32>
    %c0_9 = arith.constant 0 : index
    %c0_10 = arith.constant 0 : index
    %5 = vector.load %arg6[%c0_9, %c0_10] : memref<128x32xf32, #tpu.memory_space<vmem>>, vector<128x32xf32>
    %c0_11 = arith.constant 0 : index
    %c0_12 = arith.constant 0 : index
    %6 = vector.load %arg1[%c0_11, %c0_12] : memref<16x32xf32, #tpu.memory_space<vmem>>, vector<16x32xf32>
    %cst = arith.constant dense<0.000000e+00> : vector<16xf32>
    %7 = vector.multi_reduction <add>, %6, %cst [1] : vector<16x32xf32> to vector<16xf32>
    %8 = vector.shape_cast %7 : vector<16xf32> to vector<16x1xf32>
    %cst_13 = arith.constant 3.200000e+01 : f32
    %9 = vector.broadcast %cst_13 : f32 to vector<16x1xf32>
    %10 = arith.divf %8, %9 : vector<16x1xf32>
    %11 = vector.broadcast %10 : vector<16x1xf32> to vector<16x32xf32>
    %12 = arith.subf %6, %11 : vector<16x32xf32>
    %13 = arith.mulf %12, %12 : vector<16x32xf32>
    %cst_14 = arith.constant dense<0.000000e+00> : vector<16xf32>
    %14 = vector.multi_reduction <add>, %13, %cst_14 [1] : vector<16x32xf32> to vector<16xf32>
    %15 = vector.shape_cast %14 : vector<16xf32> to vector<16x1xf32>
    %cst_15 = arith.constant 3.200000e+01 : f32
    %16 = vector.broadcast %cst_15 : f32 to vector<16x1xf32>
    %17 = arith.divf %15, %16 : vector<16x1xf32>
    %cst_16 = arith.constant 9.99999974E-6 : f32
    %18 = vector.broadcast %cst_16 : f32 to vector<16x1xf32>
    %19 = arith.addf %17, %18 : vector<16x1xf32>
    %20 = math.rsqrt %19 : vector<16x1xf32>
    %21 = vector.broadcast %20 : vector<16x1xf32> to vector<16x32xf32>
    %22 = arith.mulf %12, %21 : vector<16x32xf32>
    %23 = vector.broadcast %0 : vector<1x32xf32> to vector<16x32xf32>
    %24 = arith.mulf %22, %23 : vector<16x32xf32>
    %25 = vector.broadcast %1 : vector<1x32xf32> to vector<16x32xf32>
    %26 = arith.addf %24, %25 : vector<16x32xf32>
    %cst_17 = arith.constant dense<0.000000e+00> : vector<16x128xf32>
    %27 = tpu.matmul %26, %4, %cst_17 {dimension_numbers = #tpu.dot_dimension_numbers<[1], [0], [0], [1], [0, 0, 1, 1], [], []>} : vector<16x32xf32>, vector<32x128xf32>, vector<16x128xf32> -> vector<16x128xf32>
    %28 = vector.broadcast %2 : vector<1x128xf32> to vector<16x128xf32>
    %29 = arith.addf %27, %28 : vector<16x128xf32>
    %cst_18 = arith.constant 5.000000e-01 : f32
    %30 = vector.broadcast %cst_18 : f32 to vector<16x128xf32>
    %31 = arith.mulf %30, %29 : vector<16x128xf32>
    %cst_19 = arith.constant 4.471500e-02 : f32
    %32 = vector.broadcast %cst_19 : f32 to vector<16x128xf32>
    %33 = arith.mulf %32, %29 : vector<16x128xf32>
    %34 = arith.mulf %33, %29 : vector<16x128xf32>
    %35 = arith.mulf %34, %29 : vector<16x128xf32>
    %36 = arith.addf %29, %35 : vector<16x128xf32>
    %cst_20 = arith.constant 0.797884583 : f32
    %37 = vector.broadcast %cst_20 : f32 to vector<16x128xf32>
    %38 = arith.mulf %37, %36 : vector<16x128xf32>
    %39 = math.tanh %38 : vector<16x128xf32>
    %cst_21 = arith.constant 1.000000e+00 : f32
    %40 = vector.broadcast %cst_21 : f32 to vector<16x128xf32>
    %41 = arith.addf %40, %39 : vector<16x128xf32>
    %42 = arith.mulf %31, %41 : vector<16x128xf32>
    %cst_22 = arith.constant dense<0.000000e+00> : vector<16x32xf32>
    %43 = tpu.matmul %42, %5, %cst_22 {dimension_numbers = #tpu.dot_dimension_numbers<[1], [0], [0], [1], [0, 0, 1, 1], [], []>} : vector<16x128xf32>, vector<128x32xf32>, vector<16x32xf32> -> vector<16x32xf32>
    %44 = vector.broadcast %3 : vector<1x32xf32> to vector<16x32xf32>
    %45 = arith.addf %43, %44 : vector<16x32xf32>
    %46 = arith.addf %45, %6 : vector<16x32xf32>
    %c0_23 = arith.constant 0 : index
    %c0_24 = arith.constant 0 : index
    %47 = vector.load %arg8[%c0_23, %c0_24] : memref<16x32xf32, #tpu.memory_space<vmem>>, vector<16x32xf32>
    tpu.vector_store %arg8[%c0_23, %c0_24], %46 {strides = array<i32>} : memref<16x32xf32, #tpu.memory_space<vmem>>, vector<16x32xf32>,
    return
  }
  func.func @transform_0(%arg0: i32) -> (i32, i32) {
    %c0_i32 = arith.constant 0 : i32
    %c0_i32_0 = arith.constant 0 : i32
    return %arg0, %c0_i32 : i32, i32
  }
  func.func @transform_1(%arg0: i32) -> (i32, i32) {
    %c0_i32 = arith.constant 0 : i32
    %c0_i32_0 = arith.constant 0 : i32
    %c0_i32_1 = arith.constant 0 : i32
    return %c0_i32, %c0_i32_0 : i32, i32
  }
  func.func @transform_2(%arg0: i32) -> (i32, i32) {
    %c0_i32 = arith.constant 0 : i32
    %c0_i32_0 = arith.constant 0 : i32
    %c0_i32_1 = arith.constant 0 : i32
    return %c0_i32, %c0_i32_0 : i32, i32
  }
  func.func @transform_3(%arg0: i32) -> (i32, i32) {
    %c0_i32 = arith.constant 0 : i32
    %c0_i32_0 = arith.constant 0 : i32
    %c0_i32_1 = arith.constant 0 : i32
    return %c0_i32, %c0_i32_0 : i32, i32
  }
  func.func @transform_4(%arg0: i32) -> (i32, i32) {
    %c0_i32 = arith.constant 0 : i32
    %c0_i32_0 = arith.constant 0 : i32
    %c0_i32_1 = arith.constant 0 : i32
    return %c0_i32, %c0_i32_0 : i32, i32
  }
  func.func @transform_5(%arg0: i32) -> (i32, i32) {
    %c0_i32 = arith.constant 0 : i32
    %c0_i32_0 = arith.constant 0 : i32
    %c0_i32_1 = arith.constant 0 : i32
    return %c0_i32, %c0_i32_0 : i32, i32
  }
  func.func @transform_6(%arg0: i32) -> (i32, i32) {
    %c0_i32 = arith.constant 0 : i32
    %c0_i32_0 = arith.constant 0 : i32
    %c0_i32_1 = arith.constant 0 : i32
    return %c0_i32, %c0_i32_0 : i32, i32
  }
  func.func @transform_7(%arg0: i32) -> (i32, i32) {
    %c0_i32 = arith.constant 0 : i32
    %c0_i32_0 = arith.constant 0 : i32
    return %arg0, %c0_i32 : i32, i32
  }
}

</mosaic_0001>

<llo_original>
// kernel: tpu_custom_call.1
$region0: #{tpu_custom_call.1}
  #allocation0 [shape = 'u32[]', space=smem, size = 0x4, offset = 0x4, fixed_abs, tag = 'smem constant byte address 0x4 - core index']
  #allocation1 [shape = 'u32[72,128]{1,0:T(1,128)}', space=vmem, size = 0x9000, scoped, tag = 'internal scratch']
  %s0 = inlined_call_operand.vmem [shape: f32[16,32], index: 0, kind: input, shape index: {}]
  %s1 = inlined_call_operand.vmem [shape: f32[1,32], index: 1, kind: input, shape index: {}]
  %s2 = inlined_call_operand.vmem [shape: f32[1,32], index: 2, kind: input, shape index: {}]
  %s3 = inlined_call_operand.vmem [shape: f32[32,128], index: 3, kind: input, shape index: {}]
  %s4 = inlined_call_operand.vmem [shape: f32[1,128], index: 4, kind: input, shape index: {}]
  %s5 = inlined_call_operand.vmem [shape: f32[128,32], index: 5, kind: input, shape index: {}]
  %s6 = inlined_call_operand.vmem [shape: f32[1,32], index: 6, kind: input, shape index: {}]
  %s7 = inlined_call_operand.hbm [shape: f32[16,32], index: 7, kind: output, shape index: {}]
  %s8 = sld [smem:[#allocation0]]
  $region38: #{tpu_custom_call.1} parent=0
    _
  %s10 = ssub.s32 1, %s8
  %s11 = scalar_select 0, %s10, %s8
  $region1: #{tpu_custom_call.1} parent=0
    #allocation2 [shape = 'u8[8192]{0}', space=vmem, size = 0x2000, scoped, tag = 'output window, operand 0, single buffered']
    #allocation3 [shape = 's32[1]{0}', space=sflag, size = 0x4, scoped, tag = 'scoped memory for tpu_custom_call.1']
    %12 = vsyncpa [#allocation3], 0
    // Predicated region
    $region2: #{tpu_custom_call.1} parent=1 // pred_check
      _
    $region3: #{tpu_custom_call.1} parent=1 // pred_check_branch
      %14 = sbr.rel (0) target = $region5
    $region4: #{tpu_custom_call.1} parent=1 // pred_region
      _
    $region5: #{tpu_custom_call.1} parent=1 // pred_fallthru
      _
    // Predicated region
    $region6: #{tpu_custom_call.1} parent=1 // pred_check
      _
    $region7: #{tpu_custom_call.1} parent=1 // pred_check_branch
      %16 = sbr.rel (0) target = $region9
    $region8: #{tpu_custom_call.1} parent=1 // pred_region
      _
    $region9: #{tpu_custom_call.1} parent=1 // pred_fallthru
      _
    // Predicated region
    $region10: #{tpu_custom_call.1} parent=1 // pred_check
      _
    $region11: #{tpu_custom_call.1} parent=1 // pred_check_branch
      %18 = sbr.rel (0) target = $region13
    $region12: #{tpu_custom_call.1} parent=1 // pred_region
      _
    $region13: #{tpu_custom_call.1} parent=1 // pred_fallthru
      _
    // Predicated region
    $region14: #{tpu_custom_call.1} parent=1 // pred_check
      _
    $region15: #{tpu_custom_call.1} parent=1 // pred_check_branch
      %20 = sbr.rel (0) target = $region17
    $region16: #{tpu_custom_call.1} parent=1 // pred_region
      _
    $region17: #{tpu_custom_call.1} parent=1 // pred_fallthru
      _
    // Predicated region
    $region18: #{tpu_custom_call.1} parent=1 // pred_check
      _
    $region19: #{tpu_custom_call.1} parent=1 // pred_check_branch
      %22 = sbr.rel (0) target = $region21
    $region20: #{tpu_custom_call.1} parent=1 // pred_region
      _
    $region21: #{tpu_custom_call.1} parent=1 // pred_fallthru
      _
    // Predicated region
    $region22: #{tpu_custom_call.1} parent=1 // pred_check
      _
    $region23: #{tpu_custom_call.1} parent=1 // pred_check_branch
      %24 = sbr.rel (0) target = $region25
    $region24: #{tpu_custom_call.1} parent=1 // pred_region
      _
    $region25: #{tpu_custom_call.1} parent=1 // pred_fallthru
      _
    // Predicated region
    $region26: #{tpu_custom_call.1} parent=1 // pred_check
      _
    $region27: #{tpu_custom_call.1} parent=1 // pred_check_branch
      %26 = sbr.rel (0) target = $region29
    $region28: #{tpu_custom_call.1} parent=1 // pred_region
      _
    $region29: #{tpu_custom_call.1} parent=1 // pred_fallthru
      _
    %v27 = vld [vmem:[%s1] sm:$0x1]
    %v28 = vld [vmem:[%s2] sm:$0x1]
    %v29 = vld [vmem:[%s4] sm:$0x1]
    %v30 = vld [vmem:[%s6] sm:$0x1]
    %v31 = vld [vmem:[%s3] sm:$0xff]
    %v32 = vld [vmem:[%s3 + $0x8] sm:$0xff]
    %v33 = vld [vmem:[%s3 + $0x10] sm:$0xff]
    %v34 = vld [vmem:[%s3 + $0x18] sm:$0xff]
    %v35 = vld [vmem:[%s5] sm:$0xff]
    %v36 = vld [vmem:[%s5 + $0x8] sm:$0xff]
    %v37 = vld [vmem:[%s5 + $0x10] sm:$0xff]
    %v38 = vld [vmem:[%s5 + $0x18] sm:$0xff]
    %v39 = vld [vmem:[%s5 + $0x20] sm:$0xff]
    %v40 = vld [vmem:[%s5 + $0x28] sm:$0xff]
    %v41 = vld [vmem:[%s5 + $0x30] sm:$0xff]
    %v42 = vld [vmem:[%s5 + $0x38] sm:$0xff]
    %v43 = vld [vmem:[%s5 + $0x40] sm:$0xff]
    %v44 = vld [vmem:[%s5 + $0x48] sm:$0xff]
    %v45 = vld [vmem:[%s5 + $0x50] sm:$0xff]
    %v46 = vld [vmem:[%s5 + $0x58] sm:$0xff]
    %v47 = vld [vmem:[%s5 + $0x60] sm:$0xff]
    %v48 = vld [vmem:[%s5 + $0x68] sm:$0xff]
    %v49 = vld [vmem:[%s5 + $0x70] sm:$0xff]
    %v50 = vld [vmem:[%s5 + $0x78] sm:$0xff]
    %v51 = vld [vmem:[%s0] sm:$0xff]
    %v52 = vld [vmem:[%s0 + $0x8] sm:$0xff]
    %vm53 = vcmask 261120
    %v54 = vsel %vm53, %v51, 0.0
    %55 = vadd.xlane.f32.xlu0 %v54
    %v56 = vpop.xlane.xlu0 %55
    %v57 = vsel %vm53, %v52, 0.0
    %58 = vadd.xlane.f32.xlu0 %v57
    %v59 = vpop.xlane.xlu0 %58
    %v60 = vrcp.pop 32.0
    %v61 = vmul.f32 32.0, %v60
    %v62 = vsub.f32 1.0, %v61
    %v63 = vmul.f32 %v60, %v62
    %v64 = vadd.f32 %v60, %v63
    %vm65 = vweird.f32 %v60
    %v66 = vsel %vm65, %v60, %v64
    %v67 = vmul.f32 %v56, %v66
    %v68 = vmul.f32 %v59, %v66
    %v69 = vsub.f32 %v51, %v67
    %v70 = vsub.f32 %v52, %v68
    %v71 = vmul.f32 %v69, %v69
    %v72 = vmul.f32 %v70, %v70
    %v73 = vsel %vm53, %v71, 0.0
    %74 = vadd.xlane.f32.xlu0 %v73
    %v75 = vpop.xlane.xlu0 %74
    %v76 = vsel %vm53, %v72, 0.0
    %77 = vadd.xlane.f32.xlu0 %v76
    %v78 = vpop.xlane.xlu0 %77
    %v79 = vmul.f32 %v75, %v66
    %v80 = vmul.f32 %v78, %v66
    %v81 = vadd.f32 %v79, 1e-05
    %v82 = vadd.f32 %v80, 1e-05
    %v83 = vrsqrt.pop %v81
    %v84 = vmul.f32 %v83, %v81
    %v85 = vmul.f32 %v84, %v83
    %v86 = vmul.f32 0.5, %v85
    %v87 = vsub.f32 1.5, %v86
    %v88 = vmul.f32 %v83, %v87
    %vm89 = vweird.f32 %v81
    %vm90 = vweird.f32 %v83
    %vm91 = vmor %vm89, %vm90
    %v92 = vsel %vm91, %v83, %v88
    %v93 = vrsqrt.pop %v82
    %v94 = vmul.f32 %v93, %v82
    %v95 = vmul.f32 %v94, %v93
    %v96 = vmul.f32 0.5, %v95
    %v97 = vsub.f32 1.5, %v96
    %v98 = vmul.f32 %v93, %v97
    %vm99 = vweird.f32 %v82
    %vm100 = vweird.f32 %v93
    %vm101 = vmor %vm99, %vm100
    %v102 = vsel %vm101, %v93, %v98
    %v103 = vmul.f32 %v69, %v92
    %v104 = vmul.f32 %v70, %v102
    %v106 = vperm.slane %v27, 0
    %v108 = vmul.f32 %v103, %v106
    %v109 = vmul.f32 %v104, %v106
    %v111 = vperm.slane %v28, 0
    %v113 = vadd.f32 %v108, %v111
    %v114 = vadd.f32 %v109, %v111
    %v116 = vperm.slane %v29, 0
    %v119 = vsel %vm53, %v113, 0
    %v122 = vsel %vm53, %v114, 0
    %124 = vmatpush.msra.mxu0 0.0
    %125 = vmatpush.msra.mxu0 0.0
    %126 = vmatpush.msra.mxu0 0.0
    %127 = vmatpush.msra.mxu0 0.0
    %128 = vmatpush.msra.mxu0 0.0
    %129 = vmatpush.msra.mxu0 0.0
    %130 = vmatpush.msra.mxu0 0.0
    %131 = vmatpush.msra.mxu0 0.0
    %132 = vmatpush.msra.mxu0 0.0
    %133 = vmatpush.msra.mxu0 0.0
    %134 = vmatpush.msra.mxu0 0.0
    %135 = vmatpush.msra.mxu0 0.0
    %136 = vmatpush.msra.mxu0 %v34
    %137 = vmatpush.msra.mxu0 %v33
    %138 = vmatpush.msra.mxu0 %v32
    %139 = vmatpush.msra.mxu0 %v31
    %140 = vmatmul.f32.gmra.mxu0 %v119
    %v141 = vpop.f32.mrf.mxu0
    %v142 = vadd.f32 %v116, %v141
    %143 = vmatmul.f32.gmra.mxu0 %v122
    %v144 = vpop.f32.mrf.mxu0
    %v145 = vadd.f32 %v116, %v144
    %146 = vdwg.mxu0
    %v147 = vmul.f32 %v142, 0.5
    %v148 = vmul.f32 %v145, 0.5
    %v149 = vmul.f32 %v142, 0.044715
    %v150 = vmul.f32 %v145, 0.044715
    %v151 = vmul.f32 %v149, %v142
    %v152 = vmul.f32 %v150, %v145
    %v153 = vmul.f32 %v151, %v142
    %v154 = vmul.f32 %v152, %v145
    %v155 = vadd.f32 %v142, %v153
    %v156 = vadd.f32 %v145, %v154
    %v157 = vmul.f32 %v155, 0.7978846
    %v158 = vmul.f32 %v156, 0.7978846
    %v159 = vtanh.pop %v157
    %v160 = vtanh.pop %v158
    %v161 = vadd.f32 %v159, 1.0
    %v162 = vadd.f32 %v160, 1.0
    %v163 = vmul.f32 %v147, %v161
    %v164 = vmul.f32 %v148, %v162
    %v166 = vperm.slane %v30, 0
    %168 = vmatpush.msra.mxu0 %v50
    %169 = vmatpush.msra.mxu0 %v49
    %170 = vmatpush.msra.mxu0 %v48
    %171 = vmatpush.msra.mxu0 %v47
    %172 = vmatpush.msra.mxu0 %v46
    %173 = vmatpush.msra.mxu0 %v45
    %174 = vmatpush.msra.mxu0 %v44
    %175 = vmatpush.msra.mxu0 %v43
    %176 = vmatpush.msra.mxu0 %v42
    %177 = vmatpush.msra.mxu0 %v41
    %178 = vmatpush.msra.mxu0 %v40
    %179 = vmatpush.msra.mxu0 %v39
    %180 = vmatpush.msra.mxu0 %v38
    %181 = vmatpush.msra.mxu0 %v37
    %182 = vmatpush.msra.mxu0 %v36
    %183 = vmatpush.msra.mxu0 %v35
    %184 = vmatmul.f32.gmra.mxu0 %v163
    %v185 = vpop.f32.mrf.mxu0
    %v186 = vadd.f32 %v166, %v185
    %187 = vmatmul.f32.gmra.mxu0 %v164
    %v188 = vpop.f32.mrf.mxu0
    %v189 = vadd.f32 %v166, %v188
    %190 = vdwg.mxu0
    %v191 = vadd.f32 %v186, %v51
    %v192 = vadd.f32 %v189, %v52
    %193 = vst.msk [vmem:[#allocation2] sm:$0xff] %vm53, %v191
    %194 = vst.msk [vmem:[#allocation2 + $0x8] sm:$0xff] %vm53, %v192
    // Predicated region
    $region30: #{tpu_custom_call.1} parent=1 // pred_check
      _
    $region31: #{tpu_custom_call.1} parent=1 // pred_check_branch
      %196 = sbr.rel (0) target = $region33
    $region32: #{tpu_custom_call.1} parent=1 // pred_region
      %198 = vsyncadd [#allocation3], 0
      %s199 = sshll.u32 [#allocation2], 4
      %s200 = int_to_ptr.vmem [resolvable:$true] %s199
      %s201 = sshll.u32 %s7, 4
      %s202 = int_to_ptr.hbm [resolvable:$true] %s201
      %207 = dma.vmem_to_hbm [thread:$0]  %s200, 256, %s202, [#allocation3], 128, 128, 8
    $region33: #{tpu_custom_call.1} parent=1 // pred_fallthru
      _
    // Predicated region
    $region34: #{tpu_custom_call.1} parent=1 // pred_check
      _
    $region35: #{tpu_custom_call.1} parent=1 // pred_check_branch
      %209 = sbr.rel (0) target = $region37
    $region36: #{tpu_custom_call.1} parent=1 // pred_region
      %211 = dma.done [#allocation3], 256
    $region37: #{tpu_custom_call.1} parent=1 // pred_fallthru
      _
    %212 = vsyncpa [#allocation3], 1

</llo_original>
